<compile_context>
chip_gen: v5e
topology: v5e:2x2
jax: 0.10.0
libtpu: 0.0.40
codegen_flags: <defaults>
</compile_context>

<pallas_src>
import functools
from math import gcd

import jax
import jax.numpy as jnp
from jax.experimental import pallas as pl
from jax.experimental.pallas import tpu as pltpu


def attn_kernel(a_ref, s_ref, w1a_ref, w1s_ref, b1_ref, w2_ref, b2_ref,
                ctx_ref, *, use_bf16_matmul=False):
    # a_ref:   (bm, T, n_a)   block of bm batch elements
    # s_ref:   (bm, n_s)
    # w1a_ref: (n_a, n_align), w1s_ref: (n_s, n_align), b1_ref: (1, n_align)
    # w2_ref:  (1, n_align)   (densor2 weight as a row vector)
    # b2_ref:  (1, 1) scalar in SMEM
    # ctx_ref: (bm, n_a)
    bm, t, n_a = a_ref.shape
    n_align = w1a_ref.shape[1]

    a = a_ref[...]                                        # (bm, T, n_a) f32
    mm_dt = jnp.bfloat16 if use_bf16_matmul else a.dtype

    # densor1 on the (implicit) concat == a @ W1_a + (s_prev @ W1_s + b1):
    # the a-part is one merged (bm*T, n_a) @ (n_a, n_align) MXU matmul.  The
    # reshape is a free relabeling as long as T is a multiple of 8 (sublane
    # tile); T=8 in the demo.
    a2d = a.reshape(bm * t, n_a)
    h = jnp.dot(a2d.astype(mm_dt), w1a_ref[...].astype(mm_dt),
                preferred_element_type=jnp.float32)
    h = h.reshape(bm, t, n_align)
    hs = jnp.dot(s_ref[...].astype(mm_dt), w1s_ref[...].astype(mm_dt),
                 preferred_element_type=jnp.float32) + b1_ref[...]  # b1 folded
    e = jnp.tanh(h + hs[:, None, :])                      # (bm, T, n_align)

    # densor2 (n_align -> 1) + relu: VPU multiply + lane reduce (no N=1 MXU).
    energies = jnp.sum(e * w2_ref[...], axis=-1, keepdims=True) + b2_ref[0, 0]
    energies = jnp.maximum(energies, 0.0)                 # (bm, T, 1)

    # custom softmax along the sequence axis (dim=1 in torch), with the
    # normalisation deferred to the dense (bm, n_a) context.
    mx = jnp.max(energies, axis=1, keepdims=True)         # (bm, 1, 1)
    ex = jnp.exp(energies - mx)                           # (bm, T, 1)
    num = jnp.sum(ex * a, axis=1)                         # (bm, n_a)
    den = jnp.sum(ex, axis=1)                             # (bm, 1)
    ctx = num * pl.reciprocal(den, approx=True)           # (bm, n_a)
    ctx_ref[...] = ctx.astype(ctx_ref.dtype)


def _choose_block_m(m, t, n_a):
    """Largest batch tile within a ~4 MiB (per buffer) VMEM budget, keeping
    >= 2 grid steps (v7x megacore) only when each step still fills the MXU
    rows (bm*T >= 256).  Rounded for sublane / lane alignment."""
    bytes_per_row = t * n_a * 4                      # one batch row of `a`, f32
    vmem_budget = 4 << 20                            # x2 for double buffering
    bm = max(1, min(m, vmem_budget // max(bytes_per_row, 1)))
    half = pl.cdiv(m, 2)
    if half * t >= 256:                              # split only if halves fill MXU
        bm = min(bm, half)
    # multiple of 8 (sublanes) and keep bm*n_a a multiple of 128 (lanes)
    mult = max(8, 128 // gcd(n_a, 128))
    bm = ((bm + mult - 1) // mult) * mult
    return bm


def one_step_attn(a, s_prev, w1, b1, w2, b2, *, block_m=None,
                  use_bf16_matmul=False):
    """
    a:      (m, T, n_a) float32
    s_prev: (m, n_s)    float32
    w1:     (n_a + n_s, n_align)   (already transposed vs. torch's (out, in))
    b1:     (n_align,)
    w2:     (n_align, 1)
    b2:     (1,)
    returns context: (m, 1, n_a)
    """
    m, T, n_a = a.shape
    n_s = s_prev.shape[1]
    n_align = w1.shape[1]

    # split W1 into the parts acting on `a` and on `s_prev` (== concat @ W1)
    w1a = w1[:n_a, :]
    w1s = w1[n_a:, :]
    b1_2d = b1.reshape(1, n_align)
    w2_row = w2.reshape(1, n_align)
    b2_2d = b2.reshape(1, 1)

    bm = _choose_block_m(m, T, n_a) if block_m is None else max(1, min(block_m, m))
    n_blocks = pl.cdiv(m, bm)
    m_pad = n_blocks * bm
    if m_pad != m:
        a = jnp.pad(a, ((0, m_pad - m), (0, 0), (0, 0)))
        s_prev = jnp.pad(s_prev, ((0, m_pad - m), (0, 0)))

    # VMEM estimate (double-buffered a / s / ctx blocks, weights, and the
    # (bm*T, n_align) hidden intermediate); raise the scoped limit only when
    # it exceeds the 32 MiB default, staying within v7x's 64 MiB VMEM.
    est_bytes = (2 * bm * T * n_a * 4
                 + 2 * bm * n_s * 4
                 + 2 * bm * n_a * 4
                 + 2 * bm * T * n_align * 4
                 + (n_a + n_s + 2) * n_align * 4)
    compiler_kwargs = dict(dimension_semantics=("parallel",))
    if est_bytes > (24 << 20):
        compiler_kwargs["vmem_limit_bytes"] = int(min(2 * est_bytes, 60 << 20))

    kernel = functools.partial(attn_kernel, use_bf16_matmul=use_bf16_matmul)

    ctx2d = pl.pallas_call(
        kernel,
        out_shape=jax.ShapeDtypeStruct((m_pad, n_a), a.dtype),
        grid_spec=pltpu.PrefetchScalarGridSpec(
            num_scalar_prefetch=0,
            grid=(n_blocks,),
            in_specs=[
                pl.BlockSpec((bm, T, n_a), lambda i: (i, 0, 0)),
                pl.BlockSpec((bm, n_s), lambda i: (i, 0)),
                pl.BlockSpec((n_a, n_align), lambda i: (0, 0)),
                pl.BlockSpec((n_s, n_align), lambda i: (0, 0)),
                pl.BlockSpec((1, n_align), lambda i: (0, 0)),
                pl.BlockSpec((1, n_align), lambda i: (0, 0)),
                pl.BlockSpec(memory_space=pltpu.MemorySpace.SMEM),  # b2 scalar
            ],
            out_specs=pl.BlockSpec((bm, n_a), lambda i: (i, 0)),
        ),
        compiler_params=pltpu.CompilerParams(**compiler_kwargs),
    )(a, s_prev, w1a, w1s, b1_2d, w2_row, b2_2d)

    return ctx2d[:m].reshape(m, 1, n_a)


def one_step_attn_ref(a, s_prev, w1, b1, w2, b2):
    """Pure-JAX reference matching the PyTorch forward."""
    m, T, n_a = a.shape
    s_rep = jnp.broadcast_to(s_prev[:, None, :], (m, T, s_prev.shape[1]))
    concat = jnp.concatenate([a, s_rep], axis=-1)
    e = jnp.tanh(concat @ w1 + b1)
    energies = jax.nn.relu(e @ w2 + b2)          # (m, T, 1)
    mx = jnp.max(energies, axis=1, keepdims=True)
    ex = jnp.exp(energies - mx)
    alphas = ex / jnp.sum(ex, axis=1, keepdims=True)
    return jnp.sum(alphas * a, axis=1, keepdims=True)


if __name__ == "__main__":
    # small shapes consistent with the module: m batches, T time steps,
    # n_a encoder hidden, n_s decoder hidden, n_align alignment units
    m, T, n_a, n_s, n_align = 16, 8, 32, 32, 16
    input_size = n_a + n_s

    key = jax.random.PRNGKey(0)
    k_a, k_s, k_w1, k_b1, k_w2, k_b2 = jax.random.split(key, 6)

    a = jax.random.normal(k_a, (m, T, n_a), dtype=jnp.float32)
    s_prev = jax.random.normal(k_s, (m, n_s), dtype=jnp.float32)

    # deterministic parameter init (Linear weights stored as (in, out))
    w1 = 0.1 * jax.random.normal(k_w1, (input_size, n_align), dtype=jnp.float32)
    b1 = 0.1 * jax.random.normal(k_b1, (n_align,), dtype=jnp.float32)
    w2 = 0.1 * jax.random.normal(k_w2, (n_align, 1), dtype=jnp.float32)
    b2 = 0.1 * jax.random.normal(k_b2, (1,), dtype=jnp.float32)

    # f32 path: single grid step at m=16 (bm=16, bm*T = 128 MXU rows)
    ctx = jax.block_until_ready(one_step_attn(a, s_prev, w1, b1, w2, b2))
    ref = one_step_attn_ref(a, s_prev, w1, b1, w2, b2)
    assert ctx.shape == (m, 1, n_a)
    # tolerance allows the approximate (EUP) reciprocal in the softmax denom
    assert jnp.allclose(ctx, ref, atol=2e-3, rtol=2e-3)

    # multi-block + padded-batch path (auto chooser -> 2 parallel grid steps)
    m2 = 70
    a2 = jax.random.normal(jax.random.PRNGKey(1), (m2, T, n_a), dtype=jnp.float32)
    s2 = jax.random.normal(jax.random.PRNGKey(2), (m2, n_s), dtype=jnp.float32)
    ctx2 = jax.block_until_ready(one_step_attn(a2, s2, w1, b1, w2, b2))
    ref2 = one_step_attn_ref(a2, s2, w1, b1, w2, b2)
    assert ctx2.shape == (m2, 1, n_a)
    assert jnp.allclose(ctx2, ref2, atol=2e-3, rtol=2e-3)

    # optional bf16-MXU path (f32 accumulation); looser tolerance
    ctx_bf16 = jax.block_until_ready(
        one_step_attn(a, s_prev, w1, b1, w2, b2, use_bf16_matmul=True))
    assert jnp.allclose(ctx_bf16, ref, atol=5e-2, rtol=5e-2)

    print("KERNEL_OK")
</pallas_src>

<mosaic_0001>
module attributes {stable_mosaic.version = 11 : i64} {
  func.func @attn_kernel(%arg0: i32, %arg1: memref<16x8x32xf32, #tpu.memory_space<vmem>>, %arg2: memref<16x32xf32, #tpu.memory_space<vmem>>, %arg3: memref<32x16xf32, #tpu.memory_space<vmem>>, %arg4: memref<32x16xf32, #tpu.memory_space<vmem>>, %arg5: memref<1x16xf32, #tpu.memory_space<vmem>>, %arg6: memref<1x16xf32, #tpu.memory_space<vmem>>, %arg7: memref<1x1xf32, #tpu.memory_space<smem>>, %arg8: memref<16x32xf32, #tpu.memory_space<vmem>>) attributes {dimension_semantics = [#tpu.dimension_semantics<parallel>], iteration_bounds = array<i64: 1>, scalar_prefetch = 0 : i64, scratch_operands = 0 : i64, tpu.core_type = #tpu.core_type<tc>, window_params = [{transform_indices = @transform_0, window_bounds = array<i64: 16, 8, 32>}, {transform_indices = @transform_1, window_bounds = array<i64: 16, 32>}, {pipeline_mode = #tpu.pipeline_mode<synchronous>, transform_indices = @transform_2, window_bounds = array<i64: 32, 16>}, {pipeline_mode = #tpu.pipeline_mode<synchronous>, transform_indices = @transform_3, window_bounds = array<i64: 32, 16>}, {pipeline_mode = #tpu.pipeline_mode<synchronous>, transform_indices = @transform_4, window_bounds = array<i64: 1, 16>}, {pipeline_mode = #tpu.pipeline_mode<synchronous>, transform_indices = @transform_5, window_bounds = array<i64: 1, 16>}, {transform_indices = @transform_6, window_bounds = array<i64: 1, 1>}, {transform_indices = @transform_7, window_bounds = array<i64: 16, 32>}]} {
    %c0 = arith.constant 0 : index
    %c0_0 = arith.constant 0 : index
    %c0_1 = arith.constant 0 : index
    %0 = vector.load %arg1[%c0, %c0_0, %c0_1] : memref<16x8x32xf32, #tpu.memory_space<vmem>>, vector<16x8x32xf32>
    %1 = vector.shape_cast %0 : vector<16x8x32xf32> to vector<128x32xf32>
    %c0_2 = arith.constant 0 : index
    %c0_3 = arith.constant 0 : index
    %2 = vector.load %arg3[%c0_2, %c0_3] : memref<32x16xf32, #tpu.memory_space<vmem>>, vector<32x16xf32>
    %cst = arith.constant dense<0.000000e+00> : vector<128x16xf32>
    %3 = tpu.matmul %1, %2, %cst {dimension_numbers = #tpu.dot_dimension_numbers<[1], [0], [0], [1], [0, 0, 1, 1], [], []>} : vector<128x32xf32>, vector<32x16xf32>, vector<128x16xf32> -> vector<128x16xf32>
    %4 = vector.shape_cast %3 : vector<128x16xf32> to vector<16x8x16xf32>
    %c0_4 = arith.constant 0 : index
    %c0_5 = arith.constant 0 : index
    %5 = vector.load %arg2[%c0_4, %c0_5] : memref<16x32xf32, #tpu.memory_space<vmem>>, vector<16x32xf32>
    %c0_6 = arith.constant 0 : index
    %c0_7 = arith.constant 0 : index
    %6 = vector.load %arg4[%c0_6, %c0_7] : memref<32x16xf32, #tpu.memory_space<vmem>>, vector<32x16xf32>
    %cst_8 = arith.constant dense<0.000000e+00> : vector<16x16xf32>
    %7 = tpu.matmul %5, %6, %cst_8 {dimension_numbers = #tpu.dot_dimension_numbers<[1], [0], [0], [1], [0, 0, 1, 1], [], []>} : vector<16x32xf32>, vector<32x16xf32>, vector<16x16xf32> -> vector<16x16xf32>
    %c0_9 = arith.constant 0 : index
    %c0_10 = arith.constant 0 : index
    %8 = vector.load %arg5[%c0_9, %c0_10] : memref<1x16xf32, #tpu.memory_space<vmem>>, vector<1x16xf32>
    %9 = vector.broadcast %8 : vector<1x16xf32> to vector<16x16xf32>
    %10 = arith.addf %7, %9 : vector<16x16xf32>
    %11 = vector.shape_cast %10 : vector<16x16xf32> to vector<16x1x16xf32>
    %12 = vector.broadcast %11 : vector<16x1x16xf32> to vector<16x8x16xf32>
    %13 = arith.addf %4, %12 : vector<16x8x16xf32>
    %14 = math.tanh %13 : vector<16x8x16xf32>
    %c0_11 = arith.constant 0 : index
    %c0_12 = arith.constant 0 : index
    %15 = vector.load %arg6[%c0_11, %c0_12] : memref<1x16xf32, #tpu.memory_space<vmem>>, vector<1x16xf32>
    %16 = vector.shape_cast %15 : vector<1x16xf32> to vector<1x1x16xf32>
    %17 = vector.broadcast %16 : vector<1x1x16xf32> to vector<16x8x16xf32>
    %18 = arith.mulf %14, %17 : vector<16x8x16xf32>
    %cst_13 = arith.constant dense<0.000000e+00> : vector<16x8xf32>
    %19 = vector.multi_reduction <add>, %18, %cst_13 [2] : vector<16x8x16xf32> to vector<16x8xf32>
    %20 = vector.shape_cast %19 : vector<16x8xf32> to vector<16x8x1xf32>
    %c0_14 = arith.constant 0 : index
    %c0_15 = arith.constant 0 : index
    %21 = memref.load %arg7[%c0_14, %c0_15] : memref<1x1xf32, #tpu.memory_space<smem>>
    %22 = vector.broadcast %21 : f32 to vector<16x8x1xf32>
    %23 = arith.addf %20, %22 : vector<16x8x1xf32>
    %cst_16 = arith.constant 0.000000e+00 : f32
    %24 = vector.broadcast %cst_16 : f32 to vector<16x8x1xf32>
    %25 = arith.maximumf %23, %24 : vector<16x8x1xf32>
    %cst_17 = arith.constant dense<0xFF800000> : vector<16x1xf32>
    %26 = vector.multi_reduction <maximumf>, %25, %cst_17 [1] : vector<16x8x1xf32> to vector<16x1xf32>
    %27 = vector.shape_cast %26 : vector<16x1xf32> to vector<16x1x1xf32>
    %28 = vector.broadcast %27 : vector<16x1x1xf32> to vector<16x8x1xf32>
    %29 = arith.subf %25, %28 : vector<16x8x1xf32>
    %30 = math.exp %29 : vector<16x8x1xf32>
    %31 = vector.broadcast %30 : vector<16x8x1xf32> to vector<16x8x32xf32>
    %32 = arith.mulf %31, %0 : vector<16x8x32xf32>
    %cst_18 = arith.constant dense<0.000000e+00> : vector<16x32xf32>
    %33 = vector.multi_reduction <add>, %32, %cst_18 [1] : vector<16x8x32xf32> to vector<16x32xf32>
    %cst_19 = arith.constant dense<0.000000e+00> : vector<16x1xf32>
    %34 = vector.multi_reduction <add>, %30, %cst_19 [1] : vector<16x8x1xf32> to vector<16x1xf32>
    %35 = tpu.reciprocal %34 {approx = true} : vector<16x1xf32> -> vector<16x1xf32>
    %36 = vector.broadcast %35 : vector<16x1xf32> to vector<16x32xf32>
    %37 = arith.mulf %33, %36 : vector<16x32xf32>
    %c0_20 = arith.constant 0 : index
    %c0_21 = arith.constant 0 : index
    %38 = vector.load %arg8[%c0_20, %c0_21] : memref<16x32xf32, #tpu.memory_space<vmem>>, vector<16x32xf32>
    tpu.vector_store %arg8[%c0_20, %c0_21], %37 {strides = array<i32>} : memref<16x32xf32, #tpu.memory_space<vmem>>, vector<16x32xf32>,
    return
  }
  func.func @transform_0(%arg0: i32) -> (i32, i32, i32) {
    %c0_i32 = arith.constant 0 : i32
    %c0_i32_0 = arith.constant 0 : i32
    %c0_i32_1 = arith.constant 0 : i32
    return %arg0, %c0_i32, %c0_i32_0 : i32, i32, i32
  }
  func.func @transform_1(%arg0: i32) -> (i32, i32) {
    %c0_i32 = arith.constant 0 : i32
    %c0_i32_0 = arith.constant 0 : i32
    return %arg0, %c0_i32 : i32, i32
  }
  func.func @transform_2(%arg0: i32) -> (i32, i32) {
    %c0_i32 = arith.constant 0 : i32
    %c0_i32_0 = arith.constant 0 : i32
    %c0_i32_1 = arith.constant 0 : i32
    return %c0_i32, %c0_i32_0 : i32, i32
  }
  func.func @transform_3(%arg0: i32) -> (i32, i32) {
    %c0_i32 = arith.constant 0 : i32
    %c0_i32_0 = arith.constant 0 : i32
    %c0_i32_1 = arith.constant 0 : i32
    return %c0_i32, %c0_i32_0 : i32, i32
  }
  func.func @transform_4(%arg0: i32) -> (i32, i32) {
    %c0_i32 = arith.constant 0 : i32
    %c0_i32_0 = arith.constant 0 : i32
    %c0_i32_1 = arith.constant 0 : i32
    return %c0_i32, %c0_i32_0 : i32, i32
  }
  func.func @transform_5(%arg0: i32) -> (i32, i32) {
    %c0_i32 = arith.constant 0 : i32
    %c0_i32_0 = arith.constant 0 : i32
    %c0_i32_1 = arith.constant 0 : i32
    return %c0_i32, %c0_i32_0 : i32, i32
  }
  func.func @transform_6(%arg0: i32) -> (i32, i32) {
    %c0_i32 = arith.constant 0 : i32
    %c0_i32_0 = arith.constant 0 : i32
    %c0_i32_1 = arith.constant 0 : i32
    return %c0_i32, %c0_i32_0 : i32, i32
  }
  func.func @transform_7(%arg0: i32) -> (i32, i32) {
    %c0_i32 = arith.constant 0 : i32
    %c0_i32_0 = arith.constant 0 : i32
    return %arg0, %c0_i32 : i32, i32
  }
}

</mosaic_0001>

<llo_original>
// kernel: tpu_custom_call.1
$region0: #{tpu_custom_call.1}
  #allocation0 [shape = 'u32[]', space=smem, size = 0x4, offset = 0x4, fixed_abs, tag = 'smem constant byte address 0x4 - core index']
  #allocation1 [shape = 'u32[72,128]{1,0:T(1,128)}', space=vmem, size = 0x9000, scoped, tag = 'internal scratch']
  #allocation2 [shape = 'f32[1,1]{1,0:T(1,128)S(6)}', space=smem, size = 0x200, scoped, tag = 'scoped memory for tpu_custom_call.1']
  %s0 = inlined_call_operand.hbm [shape: f32[16,8,32], index: 0, kind: input, shape index: {}]
  %s1 = inlined_call_operand.vmem [shape: f32[16,32], index: 1, kind: input, shape index: {}]
  %s2 = inlined_call_operand.vmem [shape: f32[32,16], index: 2, kind: input, shape index: {}]
  %s3 = inlined_call_operand.vmem [shape: f32[32,16], index: 3, kind: input, shape index: {}]
  %s4 = inlined_call_operand.vmem [shape: f32[1,16], index: 4, kind: input, shape index: {}]
  %s5 = inlined_call_operand.vmem [shape: f32[1,16], index: 5, kind: input, shape index: {}]
  %s6 = inlined_call_operand.<no memory space> [shape: f32[1,1], index: 6, kind: input, shape index: {}]
  %s7 = inlined_call_operand.hbm [shape: f32[16,32], index: 7, kind: output, shape index: {}]
  %s8 = sld [smem:[#allocation0]]
  $region42: #{tpu_custom_call.1} parent=0
    _
  %s10 = ssub.s32 1, %s8
  %s11 = scalar_select 0, %s10, %s8
  %12 = sst [smem:[#allocation2]] %s6
  $region1: #{tpu_custom_call.1} parent=0
    #allocation3 [shape = 'u8[65536]{0}', space=vmem, size = 0x10000, scoped, tag = 'input window, operand 0, single buffered']
    #allocation4 [shape = 's32[1]{0}', space=sflag, size = 0x4, scoped, tag = 'scoped memory for tpu_custom_call.1']
    #allocation5 [shape = 's32[1]{0}', space=sflag, size = 0x4, scoped, tag = 'scoped memory for tpu_custom_call.1']
    #allocation6 [shape = 'u8[8192]{0}', space=vmem, size = 0x2000, scoped, tag = 'output window, operand 0, single buffered']
    %13 = vsyncpa [#allocation4], 0
    %14 = vsyncpa [#allocation5], 0
    // Predicated region
    $region2: #{tpu_custom_call.1} parent=1 // pred_check
      _
    $region3: #{tpu_custom_call.1} parent=1 // pred_check_branch
      %16 = sbr.rel (0) target = $region5
    $region4: #{tpu_custom_call.1} parent=1 // pred_region
      %18 = vsyncadd [#allocation4], 0
      %s19 = sshll.u32 %s0, 4
      %s20 = int_to_ptr.hbm [resolvable:$true] %s19
      %s21 = sshll.u32 [#allocation3], 4
      %s22 = int_to_ptr.vmem [resolvable:$true] %s21
      %27 = dma.hbm_to_vmem [thread:$0]  %s20, 2048, %s22, [#allocation4], 128, 128, 8
    $region5: #{tpu_custom_call.1} parent=1 // pred_fallthru
      _
    // Predicated region
    $region6: #{tpu_custom_call.1} parent=1 // pred_check
      _
    $region7: #{tpu_custom_call.1} parent=1 // pred_check_branch
      %29 = sbr.rel (0) target = $region9
    $region8: #{tpu_custom_call.1} parent=1 // pred_region
      _
    $region9: #{tpu_custom_call.1} parent=1 // pred_fallthru
      _
    // Predicated region
    $region10: #{tpu_custom_call.1} parent=1 // pred_check
      _
    $region11: #{tpu_custom_call.1} parent=1 // pred_check_branch
      %31 = sbr.rel (0) target = $region13
    $region12: #{tpu_custom_call.1} parent=1 // pred_region
      _
    $region13: #{tpu_custom_call.1} parent=1 // pred_fallthru
      _
    // Predicated region
    $region14: #{tpu_custom_call.1} parent=1 // pred_check
      _
    $region15: #{tpu_custom_call.1} parent=1 // pred_check_branch
      %33 = sbr.rel (0) target = $region17
    $region16: #{tpu_custom_call.1} parent=1 // pred_region
      _
    $region17: #{tpu_custom_call.1} parent=1 // pred_fallthru
      _
    // Predicated region
    $region18: #{tpu_custom_call.1} parent=1 // pred_check
      _
    $region19: #{tpu_custom_call.1} parent=1 // pred_check_branch
      %35 = sbr.rel (0) target = $region21
    $region20: #{tpu_custom_call.1} parent=1 // pred_region
      _
    $region21: #{tpu_custom_call.1} parent=1 // pred_fallthru
      _
    // Predicated region
    $region22: #{tpu_custom_call.1} parent=1 // pred_check
      _
    $region23: #{tpu_custom_call.1} parent=1 // pred_check_branch
      %37 = sbr.rel (0) target = $region25
    $region24: #{tpu_custom_call.1} parent=1 // pred_region
      _
    $region25: #{tpu_custom_call.1} parent=1 // pred_fallthru
      _
    // Predicated region
    $region26: #{tpu_custom_call.1} parent=1 // pred_check
      _
    $region27: #{tpu_custom_call.1} parent=1 // pred_check_branch
      %39 = sbr.rel (0) target = $region29
    $region28: #{tpu_custom_call.1} parent=1 // pred_region
      _
    $region29: #{tpu_custom_call.1} parent=1 // pred_fallthru
      _
    // Predicated region
    $region30: #{tpu_custom_call.1} parent=1 // pred_check
      _
    $region31: #{tpu_custom_call.1} parent=1 // pred_check_branch
      %41 = sbr.rel (0) target = $region33
    $region32: #{tpu_custom_call.1} parent=1 // pred_region
      %43 = dma.done [#allocation4], 2048
    $region33: #{tpu_custom_call.1} parent=1 // pred_fallthru
      _
    %v44 = vld [vmem:[#allocation3] sm:$0xff]
    %v45 = vld [vmem:[#allocation3 + $0x8] sm:$0xff]
    %v46 = vld [vmem:[#allocation3 + $0x10] sm:$0xff]
    %v47 = vld [vmem:[#allocation3 + $0x18] sm:$0xff]
    %v48 = vld [vmem:[#allocation3 + $0x20] sm:$0xff]
    %v49 = vld [vmem:[#allocation3 + $0x28] sm:$0xff]
    %v50 = vld [vmem:[#allocation3 + $0x30] sm:$0xff]
    %v51 = vld [vmem:[#allocation3 + $0x38] sm:$0xff]
    %v52 = vld [vmem:[#allocation3 + $0x40] sm:$0xff]
    %v53 = vld [vmem:[#allocation3 + $0x48] sm:$0xff]
    %v54 = vld [vmem:[#allocation3 + $0x50] sm:$0xff]
    %v55 = vld [vmem:[#allocation3 + $0x58] sm:$0xff]
    %v56 = vld [vmem:[#allocation3 + $0x60] sm:$0xff]
    %v57 = vld [vmem:[#allocation3 + $0x68] sm:$0xff]
    %v58 = vld [vmem:[#allocation3 + $0x70] sm:$0xff]
    %v59 = vld [vmem:[#allocation3 + $0x78] sm:$0xff]
    %v60 = vld [vmem:[%s2] sm:$0xff]
    %v61 = vld [vmem:[%s2 + $0x8] sm:$0xff]
    %v62 = vld [vmem:[%s2 + $0x10] sm:$0xff]
    %v63 = vld [vmem:[%s2 + $0x18] sm:$0xff]
    %vm64 = vcmask 261120
    %v66 = vsel %vm64, %v44, 0
    %v69 = vsel %vm64, %v45, 0
    %v72 = vsel %vm64, %v46, 0
    %v75 = vsel %vm64, %v47, 0
    %v78 = vsel %vm64, %v48, 0
    %v81 = vsel %vm64, %v49, 0
    %v84 = vsel %vm64, %v50, 0
    %v87 = vsel %vm64, %v51, 0
    %v90 = vsel %vm64, %v52, 0
    %v93 = vsel %vm64, %v53, 0
    %v96 = vsel %vm64, %v54, 0
    %v99 = vsel %vm64, %v55, 0
    %v102 = vsel %vm64, %v56, 0
    %v105 = vsel %vm64, %v57, 0
    %v108 = vsel %vm64, %v58, 0
    %v111 = vsel %vm64, %v59, 0
    %113 = vmatpush.msra.mxu0 0.0
    %114 = vmatpush.msra.mxu0 0.0
    %115 = vmatpush.msra.mxu0 0.0
    %116 = vmatpush.msra.mxu0 0.0
    %117 = vmatpush.msra.mxu0 0.0
    %118 = vmatpush.msra.mxu0 0.0
    %119 = vmatpush.msra.mxu0 0.0
    %120 = vmatpush.msra.mxu0 0.0
    %121 = vmatpush.msra.mxu0 0.0
    %122 = vmatpush.msra.mxu0 0.0
    %123 = vmatpush.msra.mxu0 0.0
    %124 = vmatpush.msra.mxu0 0.0
    %125 = vmatpush.msra.mxu0 %v63
    %126 = vmatpush.msra.mxu0 %v62
    %127 = vmatpush.msra.mxu0 %v61
    %128 = vmatpush.msra.mxu0 %v60
    %129 = vmatmul.f32.gmra.mxu0 %v66
    %v130 = vpop.f32.mrf.mxu0
    %v131 = vadd.f32 0.0, %v130
    %132 = vmatmul.f32.gmra.mxu0 %v69
    %v133 = vpop.f32.mrf.mxu0
    %v134 = vadd.f32 0.0, %v133
    %135 = vmatmul.f32.gmra.mxu0 %v72
    %v136 = vpop.f32.mrf.mxu0
    %v137 = vadd.f32 0.0, %v136
    %138 = vmatmul.f32.gmra.mxu0 %v75
    %v139 = vpop.f32.mrf.mxu0
    %v140 = vadd.f32 0.0, %v139
    %141 = vmatmul.f32.gmra.mxu0 %v78
    %v142 = vpop.f32.mrf.mxu0
    %v143 = vadd.f32 0.0, %v142
    %144 = vmatmul.f32.gmra.mxu0 %v81
    %v145 = vpop.f32.mrf.mxu0
    %v146 = vadd.f32 0.0, %v145
    %147 = vmatmul.f32.gmra.mxu0 %v84
    %v148 = vpop.f32.mrf.mxu0
    %v149 = vadd.f32 0.0, %v148
    %150 = vmatmul.f32.gmra.mxu0 %v87
    %v151 = vpop.f32.mrf.mxu0
    %v152 = vadd.f32 0.0, %v151
    %153 = vmatmul.f32.gmra.mxu0 %v90
    %v154 = vpop.f32.mrf.mxu0
    %v155 = vadd.f32 0.0, %v154
    %156 = vmatmul.f32.gmra.mxu0 %v93
    %v157 = vpop.f32.mrf.mxu0
    %v158 = vadd.f32 0.0, %v157
    %159 = vmatmul.f32.gmra.mxu0 %v96
    %v160 = vpop.f32.mrf.mxu0
    %v161 = vadd.f32 0.0, %v160
    %162 = vmatmul.f32.gmra.mxu0 %v99
    %v163 = vpop.f32.mrf.mxu0
    %v164 = vadd.f32 0.0, %v163
    %165 = vmatmul.f32.gmra.mxu0 %v102
    %v166 = vpop.f32.mrf.mxu0
    %v167 = vadd.f32 0.0, %v166
    %168 = vmatmul.f32.gmra.mxu0 %v105
    %v169 = vpop.f32.mrf.mxu0
    %v170 = vadd.f32 0.0, %v169
    %171 = vmatmul.f32.gmra.mxu0 %v108
    %v172 = vpop.f32.mrf.mxu0
    %v173 = vadd.f32 0.0, %v172
    %174 = vmatmul.f32.gmra.mxu0 %v111
    %v175 = vpop.f32.mrf.mxu0
    %v176 = vadd.f32 0.0, %v175
    %177 = vdwg.mxu0
    %v178 = vld [vmem:[%s1] sm:$0xff]
    %v179 = vld [vmem:[%s1 + $0x8] sm:$0xff]
    %v180 = vld [vmem:[%s3] sm:$0xff]
    %v181 = vld [vmem:[%s3 + $0x8] sm:$0xff]
    %v182 = vld [vmem:[%s3 + $0x10] sm:$0xff]
    %v183 = vld [vmem:[%s3 + $0x18] sm:$0xff]
    %v184 = vld [vmem:[%s4] sm:$0x1]
    %v186 = vperm.slane %v184, 0
    %v189 = vsel %vm64, %v178, 0
    %v192 = vsel %vm64, %v179, 0
    %194 = vmatpush.msra.mxu0 0.0
    %195 = vmatpush.msra.mxu0 0.0
    %196 = vmatpush.msra.mxu0 0.0
    %197 = vmatpush.msra.mxu0 0.0
    %198 = vmatpush.msra.mxu0 0.0
    %199 = vmatpush.msra.mxu0 0.0
    %200 = vmatpush.msra.mxu0 0.0
    %201 = vmatpush.msra.mxu0 0.0
    %202 = vmatpush.msra.mxu0 0.0
    %203 = vmatpush.msra.mxu0 0.0
    %204 = vmatpush.msra.mxu0 0.0
    %205 = vmatpush.msra.mxu0 0.0
    %206 = vmatpush.msra.mxu0 %v183
    %207 = vmatpush.msra.mxu0 %v182
    %208 = vmatpush.msra.mxu0 %v181
    %209 = vmatpush.msra.mxu0 %v180
    %210 = vmatmul.f32.gmra.mxu0 %v189
    %v211 = vpop.f32.mrf.mxu0
    %v212 = vadd.f32 %v186, %v211
    %213 = vmatmul.f32.gmra.mxu0 %v192
    %v214 = vpop.f32.mrf.mxu0
    %v215 = vadd.f32 %v186, %v214
    %216 = vdwg.mxu0
    %v219 = vrot.slane %v212, 1
    %v220 = vrot.slane %v212, 2
    %v221 = vrot.slane %v212, 3
    %v222 = vrot.slane %v212, 4
    %v223 = vrot.slane %v212, 5
    %v224 = vrot.slane %v212, 6
    %v225 = vrot.slane %v212, 7
    %v226 = vrot.slane %v215, 1
    %v227 = vrot.slane %v215, 2
    %v228 = vrot.slane %v215, 3
    %v229 = vrot.slane %v215, 4
    %v230 = vrot.slane %v215, 5
    %v231 = vrot.slane %v215, 6
    %v232 = vrot.slane %v215, 7
    %v233 = vperm.slane %v212, 0
    %v234 = vperm.slane %v219, 0
    %v235 = vperm.slane %v220, 0
    %v236 = vperm.slane %v221, 0
    %v237 = vperm.slane %v222, 0
    %v238 = vperm.slane %v223, 0
    %v239 = vperm.slane %v224, 0
    %v240 = vperm.slane %v225, 0
    %v241 = vperm.slane %v215, 0
    %v242 = vperm.slane %v226, 0
    %v243 = vperm.slane %v227, 0
    %v244 = vperm.slane %v228, 0
    %v245 = vperm.slane %v229, 0
    %v246 = vperm.slane %v230, 0
    %v247 = vperm.slane %v231, 0
    %v248 = vperm.slane %v232, 0
    %v265 = vadd.f32 %v131, %v233
    %v266 = vadd.f32 %v134, %v234
    %v267 = vadd.f32 %v137, %v235
    %v268 = vadd.f32 %v140, %v236
    %v269 = vadd.f32 %v143, %v237
    %v270 = vadd.f32 %v146, %v238
    %v271 = vadd.f32 %v149, %v239
    %v272 = vadd.f32 %v152, %v240
    %v273 = vadd.f32 %v155, %v241
    %v274 = vadd.f32 %v158, %v242
    %v275 = vadd.f32 %v161, %v243
    %v276 = vadd.f32 %v164, %v244
    %v277 = vadd.f32 %v167, %v245
    %v278 = vadd.f32 %v170, %v246
    %v279 = vadd.f32 %v173, %v247
    %v280 = vadd.f32 %v176, %v248
    %v281 = vtanh.pop %v265
    %v282 = vtanh.pop %v266
    %v283 = vtanh.pop %v267
    %v284 = vtanh.pop %v268
    %v285 = vtanh.pop %v269
    %v286 = vtanh.pop %v270
    %v287 = vtanh.pop %v271
    %v288 = vtanh.pop %v272
    %v289 = vtanh.pop %v273
    %v290 = vtanh.pop %v274
    %v291 = vtanh.pop %v275
    %v292 = vtanh.pop %v276
    %v293 = vtanh.pop %v277
    %v294 = vtanh.pop %v278
    %v295 = vtanh.pop %v279
    %v296 = vtanh.pop %v280
    %v297 = vld [vmem:[%s5] sm:$0x1]
    %v299 = vperm.slane %v297, 0
    %v301 = vmul.f32 %v281, %v299
    %v302 = vmul.f32 %v282, %v299
    %v303 = vmul.f32 %v283, %v299
    %v304 = vmul.f32 %v284, %v299
    %v305 = vmul.f32 %v285, %v299
    %v306 = vmul.f32 %v286, %v299
    %v307 = vmul.f32 %v287, %v299
    %v308 = vmul.f32 %v288, %v299
    %v309 = vmul.f32 %v289, %v299
    %v310 = vmul.f32 %v290, %v299
    %v311 = vmul.f32 %v291, %v299
    %v312 = vmul.f32 %v292, %v299
    %v313 = vmul.f32 %v293, %v299
    %v314 = vmul.f32 %v294, %v299
    %v315 = vmul.f32 %v295, %v299
    %v316 = vmul.f32 %v296, %v299
    %vm317 = vcmask 130048
    %v318 = vsel %vm317, %v301, 0.0
    %319 = vadd.xlane.f32.xlu0 %v318
    %v320 = vpop.xlane.xlu0 %319
    %v321 = vsel %vm317, %v302, 0.0
    %322 = vadd.xlane.f32.xlu0 %v321
    %v323 = vpop.xlane.xlu0 %322
    %v324 = vsel %vm317, %v303, 0.0
    %325 = vadd.xlane.f32.xlu0 %v324
    %v326 = vpop.xlane.xlu0 %325
    %v327 = vsel %vm317, %v304, 0.0
    %328 = vadd.xlane.f32.xlu0 %v327
    %v329 = vpop.xlane.xlu0 %328
    %v330 = vsel %vm317, %v305, 0.0
    %331 = vadd.xlane.f32.xlu0 %v330
    %v332 = vpop.xlane.xlu0 %331
    %v333 = vsel %vm317, %v306, 0.0
    %334 = vadd.xlane.f32.xlu0 %v333
    %v335 = vpop.xlane.xlu0 %334
    %v336 = vsel %vm317, %v307, 0.0
    %337 = vadd.xlane.f32.xlu0 %v336
    %v338 = vpop.xlane.xlu0 %337
    %v339 = vsel %vm317, %v308, 0.0
    %340 = vadd.xlane.f32.xlu0 %v339
    %v341 = vpop.xlane.xlu0 %340
    %v342 = vsel %vm317, %v309, 0.0
    %343 = vadd.xlane.f32.xlu0 %v342
    %v344 = vpop.xlane.xlu0 %343
    %v345 = vsel %vm317, %v310, 0.0
    %346 = vadd.xlane.f32.xlu0 %v345
    %v347 = vpop.xlane.xlu0 %346
    %v348 = vsel %vm317, %v311, 0.0
    %349 = vadd.xlane.f32.xlu0 %v348
    %v350 = vpop.xlane.xlu0 %349
    %v351 = vsel %vm317, %v312, 0.0
    %352 = vadd.xlane.f32.xlu0 %v351
    %v353 = vpop.xlane.xlu0 %352
    %v354 = vsel %vm317, %v313, 0.0
    %355 = vadd.xlane.f32.xlu0 %v354
    %v356 = vpop.xlane.xlu0 %355
    %v357 = vsel %vm317, %v314, 0.0
    %358 = vadd.xlane.f32.xlu0 %v357
    %v359 = vpop.xlane.xlu0 %358
    %v360 = vsel %vm317, %v315, 0.0
    %361 = vadd.xlane.f32.xlu0 %v360
    %v362 = vpop.xlane.xlu0 %361
    %v363 = vsel %vm317, %v316, 0.0
    %364 = vadd.xlane.f32.xlu0 %v363
    %v365 = vpop.xlane.xlu0 %364
    %s366 = sld [smem:[#allocation2]]
    %v367 = vstv %s366
    %v368 = vadd.f32 %v320, %v367
    %v369 = vadd.f32 %v323, %v367
    %v370 = vadd.f32 %v326, %v367
    %v371 = vadd.f32 %v329, %v367
    %v372 = vadd.f32 %v332, %v367
    %v373 = vadd.f32 %v335, %v367
    %v374 = vadd.f32 %v338, %v367
    %v375 = vadd.f32 %v341, %v367
    %v376 = vadd.f32 %v344, %v367
    %v377 = vadd.f32 %v347, %v367
    %v378 = vadd.f32 %v350, %v367
    %v379 = vadd.f32 %v353, %v367
    %v380 = vadd.f32 %v356, %v367
    %v381 = vadd.f32 %v359, %v367
    %v382 = vadd.f32 %v362, %v367
    %v383 = vadd.f32 %v365, %v367
    %v384 = vmax.f32 %v368, 0.0
    %v385 = vmax.f32 %v369, 0.0
    %v386 = vmax.f32 %v370, 0.0
    %v387 = vmax.f32 %v371, 0.0
    %v388 = vmax.f32 %v372, 0.0
    %v389 = vmax.f32 %v373, 0.0
    %v390 = vmax.f32 %v374, 0.0
    %v391 = vmax.f32 %v375, 0.0
    %v392 = vmax.f32 %v376, 0.0
    %v393 = vmax.f32 %v377, 0.0
    %v394 = vmax.f32 %v378, 0.0
    %v395 = vmax.f32 %v379, 0.0
    %v396 = vmax.f32 %v380, 0.0
    %v397 = vmax.f32 %v381, 0.0
    %v398 = vmax.f32 %v382, 0.0
    %v399 = vmax.f32 %v383, 0.0
    %v400 = vrot.slane %v384, 4
    %v401 = vmax.f32 %v384, %v400
    %v402 = vrot.slane %v401, 2
    %v403 = vmax.f32 %v401, %v402
    %v404 = vrot.slane %v403, 1
    %v405 = vmax.f32 %v403, %v404
    %v406 = vrot.slane %v385, 4
    %v407 = vmax.f32 %v385, %v406
    %v408 = vrot.slane %v407, 2
    %v409 = vmax.f32 %v407, %v408
    %v410 = vrot.slane %v409, 1
    %v411 = vmax.f32 %v409, %v410
    %v412 = vrot.slane %v386, 4
    %v413 = vmax.f32 %v386, %v412
    %v414 = vrot.slane %v413, 2
    %v415 = vmax.f32 %v413, %v414
    %v416 = vrot.slane %v415, 1
    %v417 = vmax.f32 %v415, %v416
    %v418 = vrot.slane %v387, 4
    %v419 = vmax.f32 %v387, %v418
    %v420 = vrot.slane %v419, 2
    %v421 = vmax.f32 %v419, %v420
    %v422 = vrot.slane %v421, 1
    %v423 = vmax.f32 %v421, %v422
    %v424 = vrot.slane %v388, 4
    %v425 = vmax.f32 %v388, %v424
    %v426 = vrot.slane %v425, 2
    %v427 = vmax.f32 %v425, %v426
    %v428 = vrot.slane %v427, 1
    %v429 = vmax.f32 %v427, %v428
    %v430 = vrot.slane %v389, 4
    %v431 = vmax.f32 %v389, %v430
    %v432 = vrot.slane %v431, 2
    %v433 = vmax.f32 %v431, %v432
    %v434 = vrot.slane %v433, 1
    %v435 = vmax.f32 %v433, %v434
    %v436 = vrot.slane %v390, 4
    %v437 = vmax.f32 %v390, %v436
    %v438 = vrot.slane %v437, 2
    %v439 = vmax.f32 %v437, %v438
    %v440 = vrot.slane %v439, 1
    %v441 = vmax.f32 %v439, %v440
    %v442 = vrot.slane %v391, 4
    %v443 = vmax.f32 %v391, %v442
    %v444 = vrot.slane %v443, 2
    %v445 = vmax.f32 %v443, %v444
    %v446 = vrot.slane %v445, 1
    %v447 = vmax.f32 %v445, %v446
    %v448 = vrot.slane %v392, 4
    %v449 = vmax.f32 %v392, %v448
    %v450 = vrot.slane %v449, 2
    %v451 = vmax.f32 %v449, %v450
    %v452 = vrot.slane %v451, 1
    %v453 = vmax.f32 %v451, %v452
    %v454 = vrot.slane %v393, 4
    %v455 = vmax.f32 %v393, %v454
    %v456 = vrot.slane %v455, 2
    %v457 = vmax.f32 %v455, %v456
    %v458 = vrot.slane %v457, 1
    %v459 = vmax.f32 %v457, %v458
    %v460 = vrot.slane %v394, 4
    %v461 = vmax.f32 %v394, %v460
    %v462 = vrot.slane %v461, 2
    %v463 = vmax.f32 %v461, %v462
    %v464 = vrot.slane %v463, 1
    %v465 = vmax.f32 %v463, %v464
    %v466 = vrot.slane %v395, 4
    %v467 = vmax.f32 %v395, %v466
    %v468 = vrot.slane %v467, 2
    %v469 = vmax.f32 %v467, %v468
    %v470 = vrot.slane %v469, 1
    %v471 = vmax.f32 %v469, %v470
    %v472 = vrot.slane %v396, 4
    %v473 = vmax.f32 %v396, %v472
    %v474 = vrot.slane %v473, 2
    %v475 = vmax.f32 %v473, %v474
    %v476 = vrot.slane %v475, 1
    %v477 = vmax.f32 %v475, %v476
    %v478 = vrot.slane %v397, 4
    %v479 = vmax.f32 %v397, %v478
    %v480 = vrot.slane %v479, 2
    %v481 = vmax.f32 %v479, %v480
    %v482 = vrot.slane %v481, 1
    %v483 = vmax.f32 %v481, %v482
    %v484 = vrot.slane %v398, 4
    %v485 = vmax.f32 %v398, %v484
    %v486 = vrot.slane %v485, 2
    %v487 = vmax.f32 %v485, %v486
    %v488 = vrot.slane %v487, 1
    %v489 = vmax.f32 %v487, %v488
    %v490 = vrot.slane %v399, 4
    %v491 = vmax.f32 %v399, %v490
    %v492 = vrot.slane %v491, 2
    %v493 = vmax.f32 %v491, %v492
    %v494 = vrot.slane %v493, 1
    %v495 = vmax.f32 %v493, %v494
    %v496 = vsub.f32 %v384, %v405
    %v497 = vsub.f32 %v385, %v411
    %v498 = vsub.f32 %v386, %v417
    %v499 = vsub.f32 %v387, %v423
    %v500 = vsub.f32 %v388, %v429
    %v501 = vsub.f32 %v389, %v435
    %v502 = vsub.f32 %v390, %v441
    %v503 = vsub.f32 %v391, %v447
    %v504 = vsub.f32 %v392, %v453
    %v505 = vsub.f32 %v393, %v459
    %v506 = vsub.f32 %v394, %v465
    %v507 = vsub.f32 %v395, %v471
    %v508 = vsub.f32 %v396, %v477
    %v509 = vsub.f32 %v397, %v483
    %v510 = vsub.f32 %v398, %v489
    %v511 = vsub.f32 %v399, %v495
    %v512 = vmul.f32 %v496, 1.442695
    %v513 = vpow.pop %v512
    %v514 = vmul.f32 %v497, 1.442695
    %v515 = vpow.pop %v514
    %v516 = vmul.f32 %v498, 1.442695
    %v517 = vpow.pop %v516
    %v518 = vmul.f32 %v499, 1.442695
    %v519 = vpow.pop %v518
    %v520 = vmul.f32 %v500, 1.442695
    %v521 = vpow.pop %v520
    %v522 = vmul.f32 %v501, 1.442695
    %v523 = vpow.pop %v522
    %v524 = vmul.f32 %v502, 1.442695
    %v525 = vpow.pop %v524
    %v526 = vmul.f32 %v503, 1.442695
    %v527 = vpow.pop %v526
    %v528 = vmul.f32 %v504, 1.442695
    %v529 = vpow.pop %v528
    %v530 = vmul.f32 %v505, 1.442695
    %v531 = vpow.pop %v530
    %v532 = vmul.f32 %v506, 1.442695
    %v533 = vpow.pop %v532
    %v534 = vmul.f32 %v507, 1.442695
    %v535 = vpow.pop %v534
    %v536 = vmul.f32 %v508, 1.442695
    %v537 = vpow.pop %v536
    %v538 = vmul.f32 %v509, 1.442695
    %v539 = vpow.pop %v538
    %v540 = vmul.f32 %v510, 1.442695
    %v541 = vpow.pop %v540
    %v542 = vmul.f32 %v511, 1.442695
    %v543 = vpow.pop %v542
    %v544 = vmul.f32 %v513, %v44
    %v545 = vmul.f32 %v515, %v45
    %v546 = vmul.f32 %v517, %v46
    %v547 = vmul.f32 %v519, %v47
    %v548 = vmul.f32 %v521, %v48
    %v549 = vmul.f32 %v523, %v49
    %v550 = vmul.f32 %v525, %v50
    %v551 = vmul.f32 %v527, %v51
    %v552 = vmul.f32 %v529, %v52
    %v553 = vmul.f32 %v531, %v53
    %v554 = vmul.f32 %v533, %v54
    %v555 = vmul.f32 %v535, %v55
    %v556 = vmul.f32 %v537, %v56
    %v557 = vmul.f32 %v539, %v57
    %v558 = vmul.f32 %v541, %v58
    %v559 = vmul.f32 %v543, %v59
    %v560 = vsel %vm64, %v544, 0.0
    %v561 = vrot.slane %v560, 4
    %v562 = vadd.f32 %v560, %v561
    %v563 = vrot.slane %v562, 2
    %v564 = vadd.f32 %v562, %v563
    %v565 = vrot.slane %v564, 1
    %v566 = vadd.f32 %v564, %v565
    %v567 = vsel %vm64, %v545, 0.0
    %v568 = vrot.slane %v567, 4
    %v569 = vadd.f32 %v567, %v568
    %v570 = vrot.slane %v569, 2
    %v571 = vadd.f32 %v569, %v570
    %v572 = vrot.slane %v571, 1
    %v573 = vadd.f32 %v571, %v572
    %v574 = vsel %vm64, %v546, 0.0
    %v575 = vrot.slane %v574, 4
    %v576 = vadd.f32 %v574, %v575
    %v577 = vrot.slane %v576, 2
    %v578 = vadd.f32 %v576, %v577
    %v579 = vrot.slane %v578, 1
    %v580 = vadd.f32 %v578, %v579
    %v581 = vsel %vm64, %v547, 0.0
    %v582 = vrot.slane %v581, 4
    %v583 = vadd.f32 %v581, %v582
    %v584 = vrot.slane %v583, 2
    %v585 = vadd.f32 %v583, %v584
    %v586 = vrot.slane %v585, 1
    %v587 = vadd.f32 %v585, %v586
    %v588 = vsel %vm64, %v548, 0.0
    %v589 = vrot.slane %v588, 4
    %v590 = vadd.f32 %v588, %v589
    %v591 = vrot.slane %v590, 2
    %v592 = vadd.f32 %v590, %v591
    %v593 = vrot.slane %v592, 1
    %v594 = vadd.f32 %v592, %v593
    %v595 = vsel %vm64, %v549, 0.0
    %v596 = vrot.slane %v595, 4
    %v597 = vadd.f32 %v595, %v596
    %v598 = vrot.slane %v597, 2
    %v599 = vadd.f32 %v597, %v598
    %v600 = vrot.slane %v599, 1
    %v601 = vadd.f32 %v599, %v600
    %v602 = vsel %vm64, %v550, 0.0
    %v603 = vrot.slane %v602, 4
    %v604 = vadd.f32 %v602, %v603
    %v605 = vrot.slane %v604, 2
    %v606 = vadd.f32 %v604, %v605
    %v607 = vrot.slane %v606, 1
    %v608 = vadd.f32 %v606, %v607
    %v609 = vsel %vm64, %v551, 0.0
    %v610 = vrot.slane %v609, 4
    %v611 = vadd.f32 %v609, %v610
    %v612 = vrot.slane %v611, 2
    %v613 = vadd.f32 %v611, %v612
    %v614 = vrot.slane %v613, 1
    %v615 = vadd.f32 %v613, %v614
    %v616 = vsel %vm64, %v552, 0.0
    %v617 = vrot.slane %v616, 4
    %v618 = vadd.f32 %v616, %v617
    %v619 = vrot.slane %v618, 2
    %v620 = vadd.f32 %v618, %v619
    %v621 = vrot.slane %v620, 1
    %v622 = vadd.f32 %v620, %v621
    %v623 = vsel %vm64, %v553, 0.0
    %v624 = vrot.slane %v623, 4
    %v625 = vadd.f32 %v623, %v624
    %v626 = vrot.slane %v625, 2
    %v627 = vadd.f32 %v625, %v626
    %v628 = vrot.slane %v627, 1
    %v629 = vadd.f32 %v627, %v628
    %v630 = vsel %vm64, %v554, 0.0
    %v631 = vrot.slane %v630, 4
    %v632 = vadd.f32 %v630, %v631
    %v633 = vrot.slane %v632, 2
    %v634 = vadd.f32 %v632, %v633
    %v635 = vrot.slane %v634, 1
    %v636 = vadd.f32 %v634, %v635
    %v637 = vsel %vm64, %v555, 0.0
    %v638 = vrot.slane %v637, 4
    %v639 = vadd.f32 %v637, %v638
    %v640 = vrot.slane %v639, 2
    %v641 = vadd.f32 %v639, %v640
    %v642 = vrot.slane %v641, 1
    %v643 = vadd.f32 %v641, %v642
    %v644 = vsel %vm64, %v556, 0.0
    %v645 = vrot.slane %v644, 4
    %v646 = vadd.f32 %v644, %v645
    %v647 = vrot.slane %v646, 2
    %v648 = vadd.f32 %v646, %v647
    %v649 = vrot.slane %v648, 1
    %v650 = vadd.f32 %v648, %v649
    %v651 = vsel %vm64, %v557, 0.0
    %v652 = vrot.slane %v651, 4
    %v653 = vadd.f32 %v651, %v652
    %v654 = vrot.slane %v653, 2
    %v655 = vadd.f32 %v653, %v654
    %v656 = vrot.slane %v655, 1
    %v657 = vadd.f32 %v655, %v656
    %v658 = vsel %vm64, %v558, 0.0
    %v659 = vrot.slane %v658, 4
    %v660 = vadd.f32 %v658, %v659
    %v661 = vrot.slane %v660, 2
    %v662 = vadd.f32 %v660, %v661
    %v663 = vrot.slane %v662, 1
    %v664 = vadd.f32 %v662, %v663
    %v665 = vsel %vm64, %v559, 0.0
    %v666 = vrot.slane %v665, 4
    %v667 = vadd.f32 %v665, %v666
    %v668 = vrot.slane %v667, 2
    %v669 = vadd.f32 %v667, %v668
    %v670 = vrot.slane %v669, 1
    %v671 = vadd.f32 %v669, %v670
    %v672 = vrot.slane %v513, 4
    %v673 = vadd.f32 %v513, %v672
    %v674 = vrot.slane %v673, 2
    %v675 = vadd.f32 %v673, %v674
    %v676 = vrot.slane %v675, 1
    %v677 = vadd.f32 %v675, %v676
    %v678 = vrot.slane %v515, 4
    %v679 = vadd.f32 %v515, %v678
    %v680 = vrot.slane %v679, 2
    %v681 = vadd.f32 %v679, %v680
    %v682 = vrot.slane %v681, 1
    %v683 = vadd.f32 %v681, %v682
    %v684 = vrot.slane %v517, 4
    %v685 = vadd.f32 %v517, %v684
    %v686 = vrot.slane %v685, 2
    %v687 = vadd.f32 %v685, %v686
    %v688 = vrot.slane %v687, 1
    %v689 = vadd.f32 %v687, %v688
    %v690 = vrot.slane %v519, 4
    %v691 = vadd.f32 %v519, %v690
    %v692 = vrot.slane %v691, 2
    %v693 = vadd.f32 %v691, %v692
    %v694 = vrot.slane %v693, 1
    %v695 = vadd.f32 %v693, %v694
    %v696 = vrot.slane %v521, 4
    %v697 = vadd.f32 %v521, %v696
    %v698 = vrot.slane %v697, 2
    %v699 = vadd.f32 %v697, %v698
    %v700 = vrot.slane %v699, 1
    %v701 = vadd.f32 %v699, %v700
    %v702 = vrot.slane %v523, 4
    %v703 = vadd.f32 %v523, %v702
    %v704 = vrot.slane %v703, 2
    %v705 = vadd.f32 %v703, %v704
    %v706 = vrot.slane %v705, 1
    %v707 = vadd.f32 %v705, %v706
    %v708 = vrot.slane %v525, 4
    %v709 = vadd.f32 %v525, %v708
    %v710 = vrot.slane %v709, 2
    %v711 = vadd.f32 %v709, %v710
    %v712 = vrot.slane %v711, 1
    %v713 = vadd.f32 %v711, %v712
    %v714 = vrot.slane %v527, 4
    %v715 = vadd.f32 %v527, %v714
    %v716 = vrot.slane %v715, 2
    %v717 = vadd.f32 %v715, %v716
    %v718 = vrot.slane %v717, 1
    %v719 = vadd.f32 %v717, %v718
    %v720 = vrot.slane %v529, 4
    %v721 = vadd.f32 %v529, %v720
    %v722 = vrot.slane %v721, 2
    %v723 = vadd.f32 %v721, %v722
    %v724 = vrot.slane %v723, 1
    %v725 = vadd.f32 %v723, %v724
    %v726 = vrot.slane %v531, 4
    %v727 = vadd.f32 %v531, %v726
    %v728 = vrot.slane %v727, 2
    %v729 = vadd.f32 %v727, %v728
    %v730 = vrot.slane %v729, 1
    %v731 = vadd.f32 %v729, %v730
    %v732 = vrot.slane %v533, 4
    %v733 = vadd.f32 %v533, %v732
    %v734 = vrot.slane %v733, 2
    %v735 = vadd.f32 %v733, %v734
    %v736 = vrot.slane %v735, 1
    %v737 = vadd.f32 %v735, %v736
    %v738 = vrot.slane %v535, 4
    %v739 = vadd.f32 %v535, %v738
    %v740 = vrot.slane %v739, 2
    %v741 = vadd.f32 %v739, %v740
    %v742 = vrot.slane %v741, 1
    %v743 = vadd.f32 %v741, %v742
    %v744 = vrot.slane %v537, 4
    %v745 = vadd.f32 %v537, %v744
    %v746 = vrot.slane %v745, 2
    %v747 = vadd.f32 %v745, %v746
    %v748 = vrot.slane %v747, 1
    %v749 = vadd.f32 %v747, %v748
    %v750 = vrot.slane %v539, 4
    %v751 = vadd.f32 %v539, %v750
    %v752 = vrot.slane %v751, 2
    %v753 = vadd.f32 %v751, %v752
    %v754 = vrot.slane %v753, 1
    %v755 = vadd.f32 %v753, %v754
    %v756 = vrot.slane %v541, 4
    %v757 = vadd.f32 %v541, %v756
    %v758 = vrot.slane %v757, 2
    %v759 = vadd.f32 %v757, %v758
    %v760 = vrot.slane %v759, 1
    %v761 = vadd.f32 %v759, %v760
    %v762 = vrot.slane %v543, 4
    %v763 = vadd.f32 %v543, %v762
    %v764 = vrot.slane %v763, 2
    %v765 = vadd.f32 %v763, %v764
    %v766 = vrot.slane %v765, 1
    %v767 = vadd.f32 %v765, %v766
    %v768 = vrcp.pop %v677
    %v769 = vrcp.pop %v683
    %v770 = vrcp.pop %v689
    %v771 = vrcp.pop %v695
    %v772 = vrcp.pop %v701
    %v773 = vrcp.pop %v707
    %v774 = vrcp.pop %v713
    %v775 = vrcp.pop %v719
    %v776 = vrcp.pop %v725
    %v777 = vrcp.pop %v731
    %v778 = vrcp.pop %v737
    %v779 = vrcp.pop %v743
    %v780 = vrcp.pop %v749
    %v781 = vrcp.pop %v755
    %v782 = vrcp.pop %v761
    %v783 = vrcp.pop %v767
    %v784 = vmul.f32 %v566, %v768
    %v785 = vmul.f32 %v573, %v769
    %v786 = vmul.f32 %v580, %v770
    %v787 = vmul.f32 %v587, %v771
    %v788 = vmul.f32 %v594, %v772
    %v789 = vmul.f32 %v601, %v773
    %v790 = vmul.f32 %v608, %v774
    %v791 = vmul.f32 %v615, %v775
    %v792 = vmul.f32 %v622, %v776
    %v793 = vmul.f32 %v629, %v777
    %v794 = vmul.f32 %v636, %v778
    %v795 = vmul.f32 %v643, %v779
    %v796 = vmul.f32 %v650, %v780
    %v797 = vmul.f32 %v657, %v781
    %v798 = vmul.f32 %v664, %v782
    %v799 = vmul.f32 %v671, %v783
    %vm816 = vcmask 1041409
    %v817 = vsel %vm816, %v785, %v784
    %vm818 = vcmask 1042434
    %v819 = vsel %vm818, %v786, %v817
    %vm820 = vcmask 1043459
    %v821 = vsel %vm820, %v787, %v819
    %vm822 = vcmask 1044484
    %v823 = vsel %vm822, %v788, %v821
    %vm824 = vcmask 1045509
    %v825 = vsel %vm824, %v789, %v823
    %vm826 = vcmask 1046534
    %v827 = vsel %vm826, %v790, %v825
    %vm828 = vcmask 1047559
    %v829 = vsel %vm828, %v791, %v827
    %v830 = vsel %vm816, %v793, %v792
    %v831 = vsel %vm818, %v794, %v830
    %v832 = vsel %vm820, %v795, %v831
    %v833 = vsel %vm822, %v796, %v832
    %v834 = vsel %vm824, %v797, %v833
    %v835 = vsel %vm826, %v798, %v834
    %v836 = vsel %vm828, %v799, %v835
    %839 = vst.msk [vmem:[#allocation6] sm:$0xff] %vm64, %v829
    %840 = vst.msk [vmem:[#allocation6 + $0x8] sm:$0xff] %vm64, %v836
    // Predicated region
    $region34: #{tpu_custom_call.1} parent=1 // pred_check
      _
    $region35: #{tpu_custom_call.1} parent=1 // pred_check_branch
      %842 = sbr.rel (0) target = $region37
    $region36: #{tpu_custom_call.1} parent=1 // pred_region
      %844 = vsyncadd [#allocation5], 0
      %s845 = sshll.u32 [#allocation6], 4
      %s846 = int_to_ptr.vmem [resolvable:$true] %s845
      %s847 = sshll.u32 %s7, 4
      %s848 = int_to_ptr.hbm [resolvable:$true] %s847
      %853 = dma.vmem_to_hbm [thread:$0]  %s846, 256, %s848, [#allocation5], 128, 128, 8
    $region37: #{tpu_custom_call.1} parent=1 // pred_fallthru
      _
    // Predicated region
    $region38: #{tpu_custom_call.1} parent=1 // pred_check
      _
    $region39: #{tpu_custom_call.1} parent=1 // pred_check_branch
      %855 = sbr.rel (0) target = $region41
    $region40: #{tpu_custom_call.1} parent=1 // pred_region
      %857 = dma.done [#allocation5], 256
    $region41: #{tpu_custom_call.1} parent=1 // pred_fallthru
      _
    %858 = vsyncpa [#allocation4], 1
    %859 = vsyncpa [#allocation5], 1

</llo_original>
